<compile_context>
chip_gen: v6e
topology: v6e:2x2x1
jax: 0.10.0
libtpu: 0.0.40
codegen_flags: <defaults>
</compile_context>

<pallas_src>
import jax
import jax.numpy as jnp
from jax.experimental import pallas as pl
from jax.experimental.pallas import tpu as pltpu


def _noop_alias_kernel(x_ref, o_ref):
    # Output buffer is aliased to the input buffer (input_output_aliases={0:0});
    # the data is already in place.  Only pin a fake read/write dependency on
    # the refs so ordering is preserved — no HBM traffic, no VMEM, no compute.
    pltpu.touch(x_ref)
    pltpu.touch(o_ref)


def _noop_dma_kernel(x_ref, o_ref):
    # Fallback: one whole-array HBM->HBM DMA.  No VMEM staging, no per-tile
    # pipeline overhead; the DMA engines stream at HBM bandwidth.
    def body(sem):
        cp = pltpu.make_async_copy(x_ref, o_ref, sem)
        cp.start()
        cp.wait()

    pl.run_scoped(body, pltpu.SemaphoreType.DMA)


def _call_alias(x):
    return pl.pallas_call(
        _noop_alias_kernel,
        out_shape=jax.ShapeDtypeStruct(x.shape, x.dtype),
        in_specs=[pl.BlockSpec(memory_space=pl.ANY)],
        out_specs=pl.BlockSpec(memory_space=pl.ANY),
        # Output aliases the input buffer: the "copy" is free (or, without
        # donation, a single XLA-inserted device copy before the call).
        input_output_aliases={0: 0},
        compiler_params=pltpu.CompilerParams(has_side_effects=True),
    )(x)


def _call_dma_copy(x):
    return pl.pallas_call(
        _noop_dma_kernel,
        out_shape=jax.ShapeDtypeStruct(x.shape, x.dtype),
        in_specs=[pl.BlockSpec(memory_space=pl.ANY)],
        out_specs=pl.BlockSpec(memory_space=pl.ANY),
    )(x)


def noop_forward(x):
    """Identity forward pass, matching torch `noop.forward(x) -> x`."""
    # NOTE: the truly optimal noop is `return x`; the Pallas path exists to
    # satisfy the kernel mandate while doing as close to zero work as possible.
    if x.size == 0:
        return x
    try:
        # Zero-copy: aliased output, empty (touch-only) body, grid=().
        return _call_alias(x)
    except Exception:
        # Robust fallback: single HBM->HBM DMA copy, still grid=() / pl.ANY.
        return _call_dma_copy(x)


if __name__ == "__main__":
    key = jax.random.PRNGKey(0)
    # Small NCHW input consistent with an Imagenette-style conv module.
    x = jax.random.normal(key, (2, 4, 16, 16), dtype=jnp.float32)

    y = noop_forward(x)
    jax.block_until_ready(y)

    assert y.shape == x.shape and y.dtype == x.dtype
    assert bool(jnp.array_equal(y, x))
    print("KERNEL_OK")
</pallas_src>

<mosaic_0001>
module attributes {stable_mosaic.version = 11 : i64} {
  func.func @_noop_alias_kernel(%arg0: memref<2x4x16x16xf32, #tpu.memory_space<any>>, %arg1: memref<2x4x16x16xf32, #tpu.memory_space<any>>) attributes {dimension_semantics = [], scalar_prefetch = 0 : i64, scratch_operands = 0 : i64, tpu.core_type = #tpu.core_type<tc>} {
    return
  }
}

module attributes {stable_mosaic.version = 11 : i64} {
  func.func @_noop_dma_kernel(%arg0: memref<2x4x16x16xf32, #tpu.memory_space<any>>, %arg1: memref<2x4x16x16xf32, #tpu.memory_space<any>>) attributes {dimension_semantics = [], scalar_prefetch = 0 : i64, scratch_operands = 0 : i64, tpu.core_type = #tpu.core_type<tc>} {
    "tpu.region"() ({
      %0 = tpu.sem_alloc : memref<!tpu.dma_semaphore, #tpu.memory_space<semaphore_mem>>
      tpu.enqueue_dma source(%arg0 : memref<2x4x16x16xf32, #tpu.memory_space<any>>) target(%arg1 : memref<2x4x16x16xf32, #tpu.memory_space<any>>) target_semaphore(%0 : memref<!tpu.dma_semaphore, #tpu.memory_space<semaphore_mem>>)
      tpu.wait_dma2 semaphore(%0 : memref<!tpu.dma_semaphore, #tpu.memory_space<semaphore_mem>>) src(%arg0 : memref<2x4x16x16xf32, #tpu.memory_space<any>>) dst(%arg1 : memref<2x4x16x16xf32, #tpu.memory_space<any>>)
      tpu.yield
    }) : () -> ()
    return
  }
}

</mosaic_0001>

<llo_original>
// kernel: tpu_custom_call.1
$region0: #{tpu_custom_call.1}
  #allocation0 [shape = 'u32[]', space=smem, size = 0x4, offset = 0x4, fixed_abs, tag = 'smem constant byte address 0x4 - core index']
  #allocation1 [shape = 'u32[144,128]{1,0:T(1,128)}', space=vmem, size = 0x12000, scoped, tag = 'internal scratch']
  %s0 = inlined_call_operand.hbm [shape: f32[2,4,16,16], index: 0, kind: input, shape index: {}, may-alias: {0,1}]
  %s1 = inlined_call_operand.hbm [shape: f32[2,4,16,16], index: 1, kind: output, shape index: {}, may-alias: {0,1}]
  %s2 = sld [smem:[#allocation0]]
  $region2: #{tpu_custom_call.1} parent=0
    _
  %s4 = ssub.s32 1, %s2
  %s5 = scalar_select 0, %s4, %s2

// kernel: tpu_custom_call.1
$region0: #{tpu_custom_call.1}
  #allocation0 [shape = 'u32[]', space=smem, size = 0x4, offset = 0x4, fixed_abs, tag = 'smem constant byte address 0x4 - core index']
  #allocation1 [shape = 'u32[144,128]{1,0:T(1,128)}', space=vmem, size = 0x12000, scoped, tag = 'internal scratch']
  #allocation3 [shape = 's32[]', space=sflag, size = 0x4, offset = 0, fixed_abs, tag = 'sflag constant byte address 0x0 - dummy sync flag']
  #allocation4 [shape = 'u32[0]{0}', space=smem, size = 0, offset = 0, fixed_abs, tag = 'smem constant byte address 0x0 - null']
  %s0 = inlined_call_operand.hbm [shape: f32[2,4,16,16], index: 0, kind: input, shape index: {}]
  %s1 = inlined_call_operand.hbm [shape: f32[2,4,16,16], index: 1, kind: output, shape index: {}]
  %s2 = sld [smem:[#allocation0]]
  $region3: #{tpu_custom_call.1} parent=0
    _
  %s4 = ssub.s32 1, %s2
  %s5 = scalar_select 0, %s4, %s2
  $region2: #{tpu_custom_call.1} parent=0
    #allocation2 [shape = 's32[1]{0}', space=sflag, size = 0x4, scoped, tag = 'scoped memory for tpu_custom_call.1']
    %s7 = sshll.u32 1, 14
    %s8 = sxor.u32 4294967295, %s7
    %12 = dma.general %s0, 2048, %s1, [#allocation2], 131072, [#allocation4], 0, 0
    %s13 = smul.u32 2, 4
    %s14 = smul.u32 %s13, 16
    %s15 = smul.u32 %s14, 1
    %s16 = sshll.u32 %s15, 4
    %17 = dma.done [#allocation2], %s16

</llo_original>
